<compile_context>
chip_gen: v7x
topology: tpu7x:2x2x1
jax: 0.10.0
libtpu: 0.0.40
codegen_flags: <defaults>
</compile_context>

<pallas_src>
import functools

import jax
import jax.numpy as jnp
from jax.experimental import pallas as pl
from jax.experimental.pallas import tpu as pltpu


_NEG_BIG = -1e30  # NaN-safe "-inf" for masking


def _round_up(x, m):
    return ((x + m - 1) // m) * m


def _pick_tq(n):
    """Query-tile size: keep the (tq, N) f32 score block around <= 2 MiB."""
    cap = min(512, max(128, ((2 * 1024 * 1024 // max(n, 1)) // 128) * 128))
    if n <= cap:
        return n
    for cand in (512, 256, 128):
        if cand <= cap and n % cand == 0:
            return cand
    return n


# ----------------------------------------------------------------------------
# Tiled linear kernel:  out = x @ w + b      (qkv and output projections)
# bf16 operands, f32 accumulator scratch, reduction (K) axis last.
# ----------------------------------------------------------------------------
def _linear_kernel(x_ref, w_ref, b_ref, o_ref, acc_ref):
    @pl.when(pl.program_id(2) == 0)
    def _():
        acc_ref[...] = jnp.zeros_like(acc_ref)

    acc_ref[...] += jnp.dot(x_ref[...], w_ref[...],
                            preferred_element_type=jnp.float32)

    @pl.when(pl.program_id(2) == pl.num_programs(2) - 1)
    def _():
        o_ref[...] = (acc_ref[...] + b_ref[...]).astype(o_ref.dtype)


def linear_pallas(x2d, w, b, *, out_dtype=None, tm_max=1024):
    """x2d: (M, K), w: (K, E) (in,out layout), b: (E,) -> (M, E) in out_dtype."""
    M, K = x2d.shape
    Kw, E = w.shape
    assert K == Kw, (K, Kw)
    out_dtype = out_dtype or x2d.dtype

    Kp = _round_up(K, 128)            # lane-dense contraction dim
    Ep = _round_up(E, 256)            # 256-wide MXU-friendly output dim
    tm = min(tm_max, _round_up(M, 8))
    Mp = _round_up(M, tm)
    tn = 512 if Ep % 512 == 0 else 256
    tk = 128
    for cand in (1024, 512, 256, 128):
        if Kp % cand == 0:
            tk = cand
            break

    xb = x2d.astype(jnp.bfloat16)
    wb = w.astype(jnp.bfloat16)
    xp = xb if (Mp == M and Kp == K) else jnp.pad(xb, ((0, Mp - M), (0, Kp - K)))
    wp = wb if (Kp == K and Ep == E) else jnp.pad(wb, ((0, Kp - K), (0, Ep - E)))
    bp = b.astype(jnp.float32).reshape(1, E)
    if Ep != E:
        bp = jnp.pad(bp, ((0, 0), (0, Ep - E)))

    out = pl.pallas_call(
        _linear_kernel,
        out_shape=jax.ShapeDtypeStruct((Mp, Ep), out_dtype),
        grid_spec=pltpu.PrefetchScalarGridSpec(
            num_scalar_prefetch=0,
            grid=(Mp // tm, Ep // tn, Kp // tk),
            in_specs=[
                pl.BlockSpec((tm, tk), lambda i, j, kk: (i, kk)),
                pl.BlockSpec((tk, tn), lambda i, j, kk: (kk, j)),   # weight: (K,E) tile
                pl.BlockSpec((1, tn), lambda i, j, kk: (0, j)),     # bias:   E tile only
            ],
            out_specs=pl.BlockSpec((tm, tn), lambda i, j, kk: (i, j)),
            scratch_shapes=[pltpu.VMEM((tm, tn), jnp.float32)],
        ),
        compiler_params=pltpu.CompilerParams(
            dimension_semantics=("parallel", "parallel", "arbitrary"),
        ),
    )(xp, wp, bp)
    return out[:M, :E]


# ----------------------------------------------------------------------------
# Scores + fused softmax kernel: probs[g, qtile] = softmax(scale * q @ k^T)
# (output feeds the stochastic mask sampling glue)
# ----------------------------------------------------------------------------
def _scores_softmax_kernel(q_ref, k_ref, p_ref, *, scale):
    q = q_ref[0]                                   # (tq, D) bf16
    k = k_ref[0]                                   # (N, D)  bf16
    s = jax.lax.dot_general(q, k, (((1,), (1,)), ((), ())),
                            preferred_element_type=jnp.float32) * scale
    s_max = jnp.max(s, axis=-1, keepdims=True)
    e = jnp.exp(s - s_max)
    p_ref[0] = (e / jnp.sum(e, axis=-1, keepdims=True)).astype(p_ref.dtype)


def attn_probs_pallas(q, k, scale):
    """q, k: (G, N, D) bf16 -> softmax probabilities (G, N, N) f32."""
    G, N, D = q.shape
    tq = _pick_tq(N)
    kernel = functools.partial(_scores_softmax_kernel, scale=float(scale))
    return pl.pallas_call(
        kernel,
        out_shape=jax.ShapeDtypeStruct((G, N, N), jnp.float32),
        grid_spec=pltpu.PrefetchScalarGridSpec(
            num_scalar_prefetch=0,
            grid=(G, N // tq),
            in_specs=[
                pl.BlockSpec((1, tq, D), lambda g, i: (g, i, 0)),
                pl.BlockSpec((1, N, D), lambda g, i: (g, 0, 0)),
            ],
            out_specs=pl.BlockSpec((1, tq, N), lambda g, i: (g, i, 0)),
        ),
        compiler_params=pltpu.CompilerParams(
            dimension_semantics=("parallel", "parallel"),
        ),
    )(q, k)


# ----------------------------------------------------------------------------
# Masked softmax + attn @ v kernel, flash-style: recompute scale*q@k^T per
# query tile (no re-read of the (G,N,N) scores), int8 mask (1 -> masked).
# ----------------------------------------------------------------------------
def _masked_pv_kernel(q_ref, k_ref, v_ref, m_ref, o_ref, *, scale):
    q = q_ref[0]                                   # (tq, D) bf16
    k = k_ref[0]                                   # (N, D)  bf16
    v = v_ref[0]                                   # (N, D)  bf16
    s = jax.lax.dot_general(q, k, (((1,), (1,)), ((), ())),
                            preferred_element_type=jnp.float32) * scale
    s = jnp.where(m_ref[0] != 0, _NEG_BIG, s)      # mask==1 -> -inf (NaN-safe)
    s_max = jnp.max(s, axis=-1, keepdims=True)
    p = jnp.exp(s - s_max)
    inv_l = pl.reciprocal(jnp.sum(p, axis=-1, keepdims=True), approx=True)
    out = jnp.dot(p.astype(v.dtype), v, preferred_element_type=jnp.float32)
    o_ref[0] = (out * inv_l).astype(o_ref.dtype)


def masked_attention_pv_pallas(q, k, v, mask_i8, scale, *, out_dtype):
    """q,k,v: (G,N,D) bf16; mask_i8: (G,N,N) int8 -> (G,N,D) out_dtype."""
    G, N, D = v.shape
    tq = _pick_tq(N)
    kernel = functools.partial(_masked_pv_kernel, scale=float(scale))
    return pl.pallas_call(
        kernel,
        out_shape=jax.ShapeDtypeStruct((G, N, D), out_dtype),
        grid_spec=pltpu.PrefetchScalarGridSpec(
            num_scalar_prefetch=0,
            grid=(G, N // tq),
            in_specs=[
                pl.BlockSpec((1, tq, D), lambda g, i: (g, i, 0)),
                pl.BlockSpec((1, N, D), lambda g, i: (g, 0, 0)),
                pl.BlockSpec((1, N, D), lambda g, i: (g, 0, 0)),
                pl.BlockSpec((1, tq, N), lambda g, i: (g, i, 0)),
            ],
            out_specs=pl.BlockSpec((1, tq, D), lambda g, i: (g, i, 0)),
        ),
        compiler_params=pltpu.CompilerParams(
            dimension_semantics=("parallel", "parallel"),
        ),
    )(q, k, v, mask_i8)


# ----------------------------------------------------------------------------
# mask_drop_out_dec in JAX (data-dependent sampling / scatter glue).
# Takes the already-softmaxed attention probabilities (from the Pallas kernel).
# ----------------------------------------------------------------------------
def mask_drop_out_dec_jax(attn_softmax, P, key):
    """attn_softmax: (Nb, L, L) softmax probs -> bool mask (Nb, L, L)."""
    Nb, L, _ = attn_softmax.shape
    len_f = L // 2
    aw = attn_softmax.astype(jnp.float32)

    pre_q = aw[:, :len_f, len_f:]
    lat_q = aw[:, len_f:, :len_f]
    att_query = jnp.concatenate([pre_q, lat_q], axis=1)            # (Nb, L, len_f)
    att_query_max = jnp.max(att_query, axis=-1) + 1e-6             # (Nb, L)

    sample_num = int(P * (L // 2 - 1)) * L

    pre = aw[:, :len_f, :len_f]
    pre = pre + jax.nn.relu(-jnp.min(pre, axis=-1))[..., None] + 1e-6
    lat = aw[:, len_f:, len_f:]
    lat = lat + jax.nn.relu(-jnp.min(lat, axis=-1))[..., None] + 1e-6
    eye = jnp.eye(len_f, dtype=bool)[None]
    pre = jnp.where(eye, 0.0, pre)
    lat = jnp.where(eye, 0.0, lat)

    spatial = jnp.concatenate([pre, lat], axis=1)                  # (Nb, L, len_f)
    spatial = spatial / jnp.sum(spatial, axis=-1, keepdims=True)
    att_final = spatial * att_query_max[..., None]                 # (Nb, L, len_f)

    # TODO(synk): torch.multinomial(.., replacement=False) has no Pallas/JAX
    # primitive; Gumbel top-k below is distributionally equivalent but uses a
    # different RNG stream than PyTorch.
    flat = att_final.reshape(Nb, L * len_f)
    g = jax.random.gumbel(key, flat.shape, dtype=jnp.float32)
    logw = jnp.where(flat > 0, jnp.log(jnp.where(flat > 0, flat, 1.0)), -jnp.inf)
    _, idx = jax.lax.top_k(logw + g, sample_num)                   # (Nb, sample_num)

    flag = jnp.zeros((Nb, L * len_f), jnp.float32)
    flag = flag.at[jnp.arange(Nb)[:, None], idx].set(1.0)
    prob_flag = flag.reshape(Nb, L, len_f)

    prob_w = jnp.zeros((Nb, L, L), jnp.float32)
    prob_w = prob_w.at[:, :len_f, :len_f].set(prob_flag[:, :len_f, :])
    prob_w = prob_w.at[:, len_f:, len_f:].set(prob_flag[:, len_f:, :])
    return prob_w == 1.0


# ----------------------------------------------------------------------------
# Full Attention_Dec forward
# ----------------------------------------------------------------------------
def attention_dec_forward(x, params, *, num_heads, P, key):
    """x: (B, N, C). params = (w_qkv (C,3C), b_qkv (3C,), w_proj (C,C), b_proj (C,))."""
    B, N, C = x.shape
    D = C // num_heads
    scale = D ** (-0.5)
    w_qkv, b_qkv, w_proj, b_proj = params

    # 1) qkv projection (Pallas, bf16 output feeds the bf16 attention matmuls)
    qkv = linear_pallas(x.reshape(B * N, C), w_qkv, b_qkv,
                        out_dtype=jnp.bfloat16)                    # (B*N, 3C) bf16
    qkv = qkv.reshape(B, N, 3, num_heads, D)
    qkv = jnp.transpose(qkv, (2, 0, 3, 1, 4))                      # (3, B, H, N, D)
    q, k, v = qkv[0], qkv[1], qkv[2]

    G = B * num_heads
    q2, k2, v2 = (t.reshape(G, N, D) for t in (q, k, v))

    # 2) scaled scores with fused row softmax (Pallas) -> feeds mask sampling
    probs = attn_probs_pallas(q2, k2, scale)                       # (G, N, N) f32

    # 3) stochastic mask (JAX glue on the detached probabilities)
    bool_w = mask_drop_out_dec_jax(probs, P, key)                  # (G, N, N) bool

    # 4) masked softmax + attn @ v (Pallas, flash-style recompute of q@k^T);
    #    attn_drop p=0 -> identity. Mask streamed as int8.
    ctx = masked_attention_pv_pallas(q2, k2, v2, bool_w.astype(jnp.int8),
                                     scale, out_dtype=jnp.bfloat16)  # (G, N, D)
    ctx = ctx.reshape(B, num_heads, N, D)
    ctx = jnp.transpose(ctx, (0, 2, 1, 3)).reshape(B * N, C)       # bf16

    # 5) output projection (Pallas); proj_drop p=0 -> identity
    out = linear_pallas(ctx, w_proj, b_proj, out_dtype=x.dtype).reshape(B, N, C)
    return out, bool_w


# ----------------------------------------------------------------------------
# Pure-JAX reference of the deterministic path (same precomputed mask,
# mirrors the bf16 operand casts of the Pallas kernels).
# ----------------------------------------------------------------------------
def _reference_forward(x, params, bool_w, *, num_heads):
    B, N, C = x.shape
    D = C // num_heads
    scale = D ** (-0.5)
    w_qkv, b_qkv, w_proj, b_proj = params

    xb = x.astype(jnp.bfloat16)
    qkv = jnp.einsum("bnc,ce->bne", xb, w_qkv.astype(jnp.bfloat16),
                     preferred_element_type=jnp.float32) + b_qkv
    qkv = qkv.astype(jnp.bfloat16)
    qkv = jnp.transpose(qkv.reshape(B, N, 3, num_heads, D), (2, 0, 3, 1, 4))
    q, k, v = qkv[0], qkv[1], qkv[2]

    attn = jnp.einsum("bhnd,bhmd->bhnm", q, k,
                      preferred_element_type=jnp.float32) * scale
    attn = jnp.where(bool_w.reshape(B, num_heads, N, N), _NEG_BIG, attn)
    attn = jax.nn.softmax(attn, axis=-1)
    ctx = jnp.einsum("bhnm,bhmd->bhnd", attn.astype(jnp.bfloat16), v,
                     preferred_element_type=jnp.float32)
    ctx = jnp.transpose(ctx, (0, 2, 1, 3)).reshape(B, N, C).astype(jnp.bfloat16)
    out = jnp.einsum("bnc,cd->bnd", ctx, w_proj.astype(jnp.bfloat16),
                     preferred_element_type=jnp.float32) + b_proj
    return out


if __name__ == "__main__":
    # Small shapes consistent with the module: B=2, seq N=8 (even), dim C=32,
    # 4 heads (head_dim=8), mask-sampling fraction P=0.5.
    B, N, C = 2, 8, 32
    num_heads = 4
    P = 0.5

    root = jax.random.PRNGKey(0)
    kx, kqkv, kproj, kbias, kmask = jax.random.split(root, 5)
    x = jax.random.normal(kx, (B, N, C), dtype=jnp.float32)
    w_qkv = jax.random.normal(kqkv, (C, 3 * C), dtype=jnp.float32) * 0.1
    b_qkv = jnp.zeros((3 * C,), dtype=jnp.float32)        # qkv_bias=False (default)
    w_proj = jax.random.normal(kproj, (C, C), dtype=jnp.float32) * 0.1
    b_proj = jax.random.normal(kbias, (C,), dtype=jnp.float32) * 0.1
    params = (w_qkv, b_qkv, w_proj, b_proj)

    y, bool_w = attention_dec_forward(x, params, num_heads=num_heads, P=P, key=kmask)
    y = jax.block_until_ready(y)

    # Structural checks on the stochastic mask.
    len_f = N // 2
    sample_num = int(P * (len_f - 1)) * N
    assert y.shape == (B, N, C), y.shape
    assert bool_w.shape == (B * num_heads, N, N), bool_w.shape
    assert not bool(bool_w[:, :len_f, len_f:].any())       # cross blocks never masked
    assert not bool(bool_w[:, len_f:, :len_f].any())
    assert int(bool_w.sum()) == B * num_heads * sample_num

    # Deterministic-path check vs pure-JAX reference using the same mask.
    y_ref = _reference_forward(x, params, bool_w, num_heads=num_heads)
    assert jnp.allclose(y, y_ref, atol=2e-2, rtol=2e-2), float(
        jnp.max(jnp.abs(y - y_ref)))

    print("KERNEL_OK")
</pallas_src>

<mosaic_0001>
module attributes {stable_mosaic.version = 11 : i64} {
  func.func @_linear_kernel(%arg0: i32, %arg1: i32, %arg2: i32, %arg3: memref<16x128xbf16, #tpu.memory_space<vmem>>, %arg4: memref<128x256xbf16, #tpu.memory_space<vmem>>, %arg5: memref<1x256xf32, #tpu.memory_space<vmem>>, %arg6: memref<16x256xbf16, #tpu.memory_space<vmem>>, %arg7: memref<16x256xf32, #tpu.memory_space<vmem>>) attributes {dimension_semantics = [#tpu.dimension_semantics<parallel>, #tpu.dimension_semantics<parallel>, #tpu.dimension_semantics<arbitrary>], iteration_bounds = array<i64: 1, 1, 1>, scalar_prefetch = 0 : i64, scratch_operands = 1 : i64, tpu.core_type = #tpu.core_type<tc>, window_params = [{transform_indices = @transform_0, window_bounds = array<i64: 16, 128>}, {transform_indices = @transform_1, window_bounds = array<i64: 128, 256>}, {transform_indices = @transform_2, window_bounds = array<i64: 1, 256>}, {transform_indices = @transform_3, window_bounds = array<i64: 16, 256>}]} {
    %c0_i32 = arith.constant 0 : i32
    %0 = arith.cmpi eq, %arg2, %c0_i32 : i32
    %1 = arith.extui %0 : i1 to i32
    %c0_i32_0 = arith.constant 0 : i32
    %2 = arith.cmpi ne, %1, %c0_i32_0 : i32
    scf.if %2 {
      %cst_10 = arith.constant 0.000000e+00 : f32
      %12 = vector.broadcast %cst_10 : f32 to vector<16x256xf32>
      %c0_11 = arith.constant 0 : index
      %c0_12 = arith.constant 0 : index
      %13 = vector.load %arg7[%c0_11, %c0_12] : memref<16x256xf32, #tpu.memory_space<vmem>>, vector<16x256xf32>
      tpu.vector_store %arg7[%c0_11, %c0_12], %12 {strides = array<i32>} : memref<16x256xf32, #tpu.memory_space<vmem>>, vector<16x256xf32>,
    } else {
    }
    %c0 = arith.constant 0 : index
    %c0_1 = arith.constant 0 : index
    %3 = vector.load %arg7[%c0, %c0_1] : memref<16x256xf32, #tpu.memory_space<vmem>>, vector<16x256xf32>
    %c0_2 = arith.constant 0 : index
    %c0_3 = arith.constant 0 : index
    %4 = vector.load %arg3[%c0_2, %c0_3] : memref<16x128xbf16, #tpu.memory_space<vmem>>, vector<16x128xbf16>
    %c0_4 = arith.constant 0 : index
    %c0_5 = arith.constant 0 : index
    %5 = vector.load %arg4[%c0_4, %c0_5] : memref<128x256xbf16, #tpu.memory_space<vmem>>, vector<128x256xbf16>
    %cst = arith.constant dense<0.000000e+00> : vector<16x256xf32>
    %6 = tpu.matmul %4, %5, %cst {dimension_numbers = #tpu.dot_dimension_numbers<[1], [0], [0], [1], [0, 0, 1, 1], [], []>} : vector<16x128xbf16>, vector<128x256xbf16>, vector<16x256xf32> -> vector<16x256xf32>
    %7 = arith.addf %3, %6 : vector<16x256xf32>
    %c0_6 = arith.constant 0 : index
    %c0_7 = arith.constant 0 : index
    %8 = vector.load %arg7[%c0_6, %c0_7] : memref<16x256xf32, #tpu.memory_space<vmem>>, vector<16x256xf32>
    tpu.vector_store %arg7[%c0_6, %c0_7], %7 {strides = array<i32>} : memref<16x256xf32, #tpu.memory_space<vmem>>, vector<16x256xf32>,
    %c0_i32_8 = arith.constant 0 : i32
    %9 = arith.cmpi eq, %arg2, %c0_i32_8 : i32
    %10 = arith.extui %9 : i1 to i32
    %c0_i32_9 = arith.constant 0 : i32
    %11 = arith.cmpi ne, %10, %c0_i32_9 : i32
    scf.if %11 {
      %c0_10 = arith.constant 0 : index
      %c0_11 = arith.constant 0 : index
      %12 = vector.load %arg7[%c0_10, %c0_11] : memref<16x256xf32, #tpu.memory_space<vmem>>, vector<16x256xf32>
      %c0_12 = arith.constant 0 : index
      %c0_13 = arith.constant 0 : index
      %13 = vector.load %arg5[%c0_12, %c0_13] : memref<1x256xf32, #tpu.memory_space<vmem>>, vector<1x256xf32>
      %14 = vector.broadcast %13 : vector<1x256xf32> to vector<16x256xf32>
      %15 = arith.addf %12, %14 : vector<16x256xf32>
      %16 = arith.truncf %15 : vector<16x256xf32> to vector<16x256xbf16>
      %c0_14 = arith.constant 0 : index
      %c0_15 = arith.constant 0 : index
      %17 = vector.load %arg6[%c0_14, %c0_15] : memref<16x256xbf16, #tpu.memory_space<vmem>>, vector<16x256xbf16>
      tpu.vector_store %arg6[%c0_14, %c0_15], %16 {strides = array<i32>} : memref<16x256xbf16, #tpu.memory_space<vmem>>, vector<16x256xbf16>,
    } else {
    }
    return
  }
  func.func @transform_0(%arg0: i32, %arg1: i32, %arg2: i32) -> (i32, i32) {
    %c0_i32 = arith.constant 0 : i32
    return %arg0, %arg2 : i32, i32
  }
  func.func @transform_1(%arg0: i32, %arg1: i32, %arg2: i32) -> (i32, i32) {
    %c0_i32 = arith.constant 0 : i32
    return %arg2, %arg1 : i32, i32
  }
  func.func @transform_2(%arg0: i32, %arg1: i32, %arg2: i32) -> (i32, i32) {
    %c0_i32 = arith.constant 0 : i32
    %c0_i32_0 = arith.constant 0 : i32
    return %c0_i32, %arg1 : i32, i32
  }
  func.func @transform_3(%arg0: i32, %arg1: i32, %arg2: i32) -> (i32, i32) {
    %c0_i32 = arith.constant 0 : i32
    return %arg0, %arg1 : i32, i32
  }
}

</mosaic_0001>

<llo_original>
// kernel: tpu_custom_call.1
$region0: #{tpu_custom_call.1}
  #allocation0 [shape = 'u32[]', space=smem, size = 0x4, offset = 0x4, fixed_abs, tag = 'smem constant byte address 0x4 - core index']
  #allocation1 [shape = 'u32[144,128]{1,0:T(1,128)}', space=vmem, size = 0x12000, scoped, tag = 'internal scratch']
  #allocation2 [shape = 'f32[16,256]{1,0:T(8,128)}', space=vmem, size = 0x4000, scoped, tag = 'scratch operand']
  %s0 = inlined_call_operand.hbm [shape: bf16[16,128], index: 0, kind: input, shape index: {}]
  %s1 = inlined_call_operand.hbm [shape: bf16[128,256], index: 1, kind: input, shape index: {}]
  %s2 = inlined_call_operand.vmem [shape: f32[1,256], index: 2, kind: input, shape index: {}]
  %s3 = inlined_call_operand.hbm [shape: bf16[16,256], index: 3, kind: output, shape index: {}]
  %s4 = sld [smem:[#allocation0]]
  $region38: #{tpu_custom_call.1} parent=0
    _
  %s6 = ssub.s32 1, %s4
  %s7 = scalar_select 0, %s6, %s4
  $region1: #{tpu_custom_call.1} parent=0
    #allocation3 [shape = 'u8[4096]{0}', space=vmem, size = 0x1000, scoped, tag = 'input window, operand 0, single buffered']
    #allocation4 [shape = 's32[1]{0}', space=sflag, size = 0x4, scoped, tag = 'scoped memory for tpu_custom_call.1']
    #allocation5 [shape = 's32[1]{0}', space=sflag, size = 0x4, scoped, tag = 'scoped memory for tpu_custom_call.1']
    #allocation6 [shape = 'u8[65536]{0}', space=vmem, size = 0x10000, scoped, tag = 'input window, operand 1, single buffered']
    #allocation7 [shape = 's32[1]{0}', space=sflag, size = 0x4, scoped, tag = 'scoped memory for tpu_custom_call.1']
    #allocation8 [shape = 'u8[8192]{0}', space=vmem, size = 0x2000, scoped, tag = 'output window, operand 0, single buffered']
    %8 = vsyncpa [#allocation4], 0
    %9 = vsyncpa [#allocation7], 0
    %10 = vsyncpa [#allocation5], 0
    // Predicated region
    $region2: #{tpu_custom_call.1} parent=1 // pred_check
      _
    $region3: #{tpu_custom_call.1} parent=1 // pred_check_branch
      %12 = sbr.rel (0) target = $region5
    $region4: #{tpu_custom_call.1} parent=1 // pred_region
      %s14 = ssub.s32 128, 128
      %15 = vsyncadd [#allocation4], %s14
      %s16 = sshll.u32 [#allocation3], 4
      %s17 = int_to_ptr.vmem [resolvable:$true] %s16
      %22 = dma.hbm_to_vmem [thread:$0]  %s0, 128, %s17, [#allocation4], 64, 64, 4
    $region5: #{tpu_custom_call.1} parent=1 // pred_fallthru
      _
    // Predicated region
    $region6: #{tpu_custom_call.1} parent=1 // pred_check
      _
    $region7: #{tpu_custom_call.1} parent=1 // pred_check_branch
      %24 = sbr.rel (0) target = $region9
    $region8: #{tpu_custom_call.1} parent=1 // pred_region
      %s26 = ssub.s32 2048, 2048
      %27 = vsyncadd [#allocation7], %s26
      %s28 = sshll.u32 [#allocation6], 4
      %s29 = int_to_ptr.vmem [resolvable:$true] %s28
      %34 = dma.hbm_to_vmem [thread:$0]  %s1, 2048, %s29, [#allocation7], 128, 128, 8
    $region9: #{tpu_custom_call.1} parent=1 // pred_fallthru
      _
    // Predicated region
    $region10: #{tpu_custom_call.1} parent=1 // pred_check
      _
    $region11: #{tpu_custom_call.1} parent=1 // pred_check_branch
      %36 = sbr.rel (0) target = $region13
    $region12: #{tpu_custom_call.1} parent=1 // pred_region
      _
    $region13: #{tpu_custom_call.1} parent=1 // pred_fallthru
      _
    // Predicated region
    $region14: #{tpu_custom_call.1} parent=1 // pred_check
      _
    $region15: #{tpu_custom_call.1} parent=1 // pred_check_branch
      %38 = sbr.rel (0) target = $region17
    $region16: #{tpu_custom_call.1} parent=1 // pred_region
      %39 = dma.done [#allocation4], 128
    $region17: #{tpu_custom_call.1} parent=1 // pred_fallthru
      _
    // Predicated region
    $region18: #{tpu_custom_call.1} parent=1 // pred_check
      _
    $region19: #{tpu_custom_call.1} parent=1 // pred_check_branch
      %41 = sbr.rel (0) target = $region21
    $region20: #{tpu_custom_call.1} parent=1 // pred_region
      %42 = dma.done [#allocation7], 2048
    $region21: #{tpu_custom_call.1} parent=1 // pred_fallthru
      _
    %p44 = scmp.eq.s32.totalorder 0, 0
    // Predicated region
    $region22: #{tpu_custom_call.1} parent=1 // pred_check
      %p45 = pneg %p44
    $region23: #{tpu_custom_call.1} parent=1 // pred_check_branch
      %47 = sbr.rel (%p45) target = $region25
    $region24: #{tpu_custom_call.1} parent=1 // pred_region
      %48 = vst [vmem:[#allocation2] sm:$0xff] 0.0
      %49 = vst [vmem:[#allocation2 + $0x8] sm:$0xff] 0.0
      %50 = vst [vmem:[#allocation2 + $0x10] sm:$0xff] 0.0
      %51 = vst [vmem:[#allocation2 + $0x18] sm:$0xff] 0.0
    $region25: #{tpu_custom_call.1} parent=1 // pred_fallthru
      _
    %v52 = vld [vmem:[#allocation2] sm:$0xff]
    %v53 = vld [vmem:[#allocation2 + $0x8] sm:$0xff]
    %v54 = vld [vmem:[#allocation2 + $0x10] sm:$0xff]
    %v55 = vld [vmem:[#allocation2 + $0x18] sm:$0xff]
    %v56 = vld [vmem:[#allocation3] sm:$0xf]
    %v57 = vld [vmem:[#allocation3 + $0x4] sm:$0xf]
    %v58 = vld [vmem:[#allocation6] sm:$0xff]
    %v59 = vld [vmem:[#allocation6 + $0x8] sm:$0xff]
    %v60 = vld [vmem:[#allocation6 + $0x10] sm:$0xff]
    %v61 = vld [vmem:[#allocation6 + $0x18] sm:$0xff]
    %v62 = vld [vmem:[#allocation6 + $0x20] sm:$0xff]
    %v63 = vld [vmem:[#allocation6 + $0x28] sm:$0xff]
    %v64 = vld [vmem:[#allocation6 + $0x30] sm:$0xff]
    %v65 = vld [vmem:[#allocation6 + $0x38] sm:$0xff]
    %v66 = vld [vmem:[#allocation6 + $0x40] sm:$0xff]
    %v67 = vld [vmem:[#allocation6 + $0x48] sm:$0xff]
    %v68 = vld [vmem:[#allocation6 + $0x50] sm:$0xff]
    %v69 = vld [vmem:[#allocation6 + $0x58] sm:$0xff]
    %v70 = vld [vmem:[#allocation6 + $0x60] sm:$0xff]
    %v71 = vld [vmem:[#allocation6 + $0x68] sm:$0xff]
    %v72 = vld [vmem:[#allocation6 + $0x70] sm:$0xff]
    %v73 = vld [vmem:[#allocation6 + $0x78] sm:$0xff]
    %v76 = vunpack.c.l.b16 %v56
    %v77 = vunpack.c.l.b16 %v57
    %v78 = vpack.c.b16 %v77, %v76
    %v96 = vunpack.c.l.b16 %v58
    %v97 = vunpack.c.h.b16 %v58
    %v98 = vunpack.c.l.b16 %v59
    %v99 = vunpack.c.h.b16 %v59
    %v100 = vunpack.c.l.b16 %v60
    %v101 = vunpack.c.h.b16 %v60
    %v102 = vunpack.c.l.b16 %v61
    %v103 = vunpack.c.h.b16 %v61
    %v104 = vunpack.c.l.b16 %v62
    %v105 = vunpack.c.h.b16 %v62
    %v106 = vunpack.c.l.b16 %v63
    %v107 = vunpack.c.h.b16 %v63
    %v108 = vunpack.c.l.b16 %v64
    %v109 = vunpack.c.h.b16 %v64
    %v110 = vunpack.c.l.b16 %v65
    %v111 = vunpack.c.h.b16 %v65
    %v112 = vunpack.c.l.b16 %v66
    %v113 = vunpack.c.h.b16 %v66
    %v114 = vunpack.c.l.b16 %v67
    %v115 = vunpack.c.h.b16 %v67
    %v116 = vunpack.c.l.b16 %v68
    %v117 = vunpack.c.h.b16 %v68
    %v118 = vunpack.c.l.b16 %v69
    %v119 = vunpack.c.h.b16 %v69
    %v120 = vunpack.c.l.b16 %v70
    %v121 = vunpack.c.h.b16 %v70
    %v122 = vunpack.c.l.b16 %v71
    %v123 = vunpack.c.h.b16 %v71
    %v124 = vunpack.c.l.b16 %v72
    %v125 = vunpack.c.h.b16 %v72
    %v126 = vunpack.c.l.b16 %v73
    %v127 = vunpack.c.h.b16 %v73
    %v128 = vpack.c.b16 %v98, %v96
    %v129 = vpack.c.b16 %v99, %v97
    %v130 = vpack.c.b16 %v102, %v100
    %v131 = vpack.c.b16 %v103, %v101
    %v132 = vpack.c.b16 %v106, %v104
    %v133 = vpack.c.b16 %v107, %v105
    %v134 = vpack.c.b16 %v110, %v108
    %v135 = vpack.c.b16 %v111, %v109
    %v136 = vpack.c.b16 %v114, %v112
    %v137 = vpack.c.b16 %v115, %v113
    %v138 = vpack.c.b16 %v118, %v116
    %v139 = vpack.c.b16 %v119, %v117
    %v140 = vpack.c.b16 %v122, %v120
    %v141 = vpack.c.b16 %v123, %v121
    %v142 = vpack.c.b16 %v126, %v124
    %v143 = vpack.c.b16 %v127, %v125
    %160 = vmatprep.subr.bf16.mxu0 %v129
    %161 = vmatpush1.bf16.msra.mxu0 %v128
    %162 = vmatprep.subr.bf16.mxu0 %v131
    %163 = vmatpush1.bf16.msra.mxu0 %v130
    %164 = vmatprep.subr.bf16.mxu0 %v133
    %165 = vmatpush1.bf16.msra.mxu0 %v132
    %166 = vmatprep.subr.bf16.mxu0 %v135
    %167 = vmatpush1.bf16.msra.mxu0 %v134
    %168 = vmatprep.subr.bf16.mxu0 %v137
    %169 = vmatpush1.bf16.msra.mxu0 %v136
    %170 = vmatprep.subr.bf16.mxu0 %v139
    %171 = vmatpush1.bf16.msra.mxu0 %v138
    %172 = vmatprep.subr.bf16.mxu0 %v141
    %173 = vmatpush1.bf16.msra.mxu0 %v140
    %174 = vmatprep.subr.bf16.mxu0 %v143
    %175 = vmatpush1.bf16.msra.mxu0 %v142
    %176 = vmatprep.subr.bf16.mxu0 0
    %177 = vmatpush1.bf16.msra.mxu0 0
    %178 = vmatprep.subr.bf16.mxu0 0
    %179 = vmatpush1.bf16.msra.mxu0 0
    %180 = vmatprep.subr.bf16.mxu0 0
    %181 = vmatpush1.bf16.msra.mxu0 0
    %182 = vmatprep.subr.bf16.mxu0 0
    %183 = vmatpush1.bf16.msra.mxu0 0
    %184 = vmatprep.subr.bf16.mxu0 0
    %185 = vmatpush1.bf16.msra.mxu0 0
    %186 = vmatprep.subr.bf16.mxu0 0
    %187 = vmatpush1.bf16.msra.mxu0 0
    %188 = vmatprep.subr.bf16.mxu0 0
    %189 = vmatpush1.bf16.msra.mxu0 0
    %190 = vmatprep.subr.bf16.mxu0 0
    %191 = vmatpush1.bf16.msra.mxu0 0
    %192 = vmatprep.mubr.bf16.mxu0 0
    %193 = vmatmul.mubr.bf16.gmra.mrb[0].mxu0 %v78
    %v194 = vpop.f32.mrb[0].mxu0
    %v195 = vadd.f32 0.0, %v194
    %v196 = vpop.f32.mrb[0].mxu0
    %v197 = vadd.f32 0.0, %v196
    %v198 = vpop.f32.mrb[0].mxu0
    %v199 = vadd.f32 0.0, %v198
    %v200 = vpop.f32.mrb[0].mxu0
    %v201 = vadd.f32 0.0, %v200
    %202 = vdwg.mxu0
    %v203 = vadd.f32 %v52, %v195
    %v204 = vadd.f32 %v53, %v197
    %v205 = vadd.f32 %v54, %v199
    %v206 = vadd.f32 %v55, %v201
    %207 = vst [vmem:[#allocation2] sm:$0xff] %v203
    %208 = vst [vmem:[#allocation2 + $0x8] sm:$0xff] %v204
    %209 = vst [vmem:[#allocation2 + $0x10] sm:$0xff] %v205
    %210 = vst [vmem:[#allocation2 + $0x18] sm:$0xff] %v206
    // Predicated region
    $region26: #{tpu_custom_call.1} parent=1 // pred_check
      %p211 = pneg %p44
    $region27: #{tpu_custom_call.1} parent=1 // pred_check_branch
      %213 = sbr.rel (%p211) target = $region29
    $region28: #{tpu_custom_call.1} parent=1 // pred_region
      %v214 = vld [vmem:[#allocation2] sm:$0xff]
      %v215 = vld [vmem:[#allocation2 + $0x8] sm:$0xff]
      %v216 = vld [vmem:[#allocation2 + $0x10] sm:$0xff]
      %v217 = vld [vmem:[#allocation2 + $0x18] sm:$0xff]
      %v218 = vld [vmem:[%s2] sm:$0x3]
      %v220 = vlaneseq
      %v221 = vshrl.u32 %v220, 7
      %v222 = vsub.s32 0, %v221
      %v223 = vrot.slane %v218, %v222
      %v224 = vlaneseq
      %v225 = vshrl.u32 %v224, 7
      %v226 = vsub.s32 1, %v225
      %v227 = vrot.slane %v218, %v226
      %v230 = vadd.f32 %v214, %v223
      %v231 = vadd.f32 %v215, %v227
      %v232 = vadd.f32 %v216, %v223
      %v233 = vadd.f32 %v217, %v227
      %v234 = vpack.c.bf16 %v232, %v230
      %v235 = vpack.c.bf16 %v233, %v231
      %v238 = vunpack.c.l.b16 %v234
      %v239 = vunpack.c.l.b16 %v235
      %v240 = vunpack.c.h.b16 %v234
      %v241 = vunpack.c.h.b16 %v235
      %v242 = vpack.c.b16 %v239, %v238
      %v243 = vpack.c.b16 %v241, %v240
      %246 = vst [vmem:[#allocation8] sm:$0xff] %v242
      %247 = vst [vmem:[#allocation8 + $0x8] sm:$0xff] %v243
    $region29: #{tpu_custom_call.1} parent=1 // pred_fallthru
      _
    // Predicated region
    $region30: #{tpu_custom_call.1} parent=1 // pred_check
      _
    $region31: #{tpu_custom_call.1} parent=1 // pred_check_branch
      %249 = sbr.rel (0) target = $region33
    $region32: #{tpu_custom_call.1} parent=1 // pred_region
      %s251 = ssub.s32 256, 256
      %252 = vsyncadd [#allocation5], %s251
      %s253 = sshll.u32 [#allocation8], 4
      %s254 = int_to_ptr.vmem [resolvable:$true] %s253
      %259 = dma.vmem_to_hbm [thread:$0]  %s254, 256, %s3, [#allocation5], 128, 128, 8
    $region33: #{tpu_custom_call.1} parent=1 // pred_fallthru
      _
    // Predicated region
    $region34: #{tpu_custom_call.1} parent=1 // pred_check
      _
    $region35: #{tpu_custom_call.1} parent=1 // pred_check_branch
      %261 = sbr.rel (0) target = $region37
    $region36: #{tpu_custom_call.1} parent=1 // pred_region
      %262 = dma.done [#allocation5], 256
    $region37: #{tpu_custom_call.1} parent=1 // pred_fallthru
      _
    %263 = vsyncpa [#allocation4], 1
    %264 = vsyncpa [#allocation7], 1
    %265 = vsyncpa [#allocation5], 1

</llo_original>
